<compile_context>
chip_gen: v6e
topology: v6e:2x2x1
jax: 0.10.0
libtpu: 0.0.40
codegen_flags: <defaults>
</compile_context>

<pallas_src>
import functools

import jax
import jax.numpy as jnp
from jax import lax
from jax.experimental import pallas as pl
from jax.experimental.pallas import tpu as pltpu


def _conv3x3_one_dot(x, w_mat, W, left_ok, right_ok):
    """3x3 'SAME' convolution as a single MXU matmul.

    x:        (C_in, H*W)     activations, flattened row-major (p = y*W + x).
    w_mat:    (C_out, 9*C_in) weights, flat index = (ky*3 + kx)*C_in + c_in.
    left_ok:  (1, H*W) bool   p % W != 0       (valid source when dx = -1)
    right_ok: (1, H*W) bool   p % W != W - 1   (valid source when dx = +1)
    returns   (C_out, H*W) float32.
    """
    C, HW = x.shape
    pad = W + 1                              # covers every |shift| = |dy*W + dx|
    zeros = jnp.zeros((C, pad), x.dtype)
    xp = jnp.concatenate([zeros, x, zeros], axis=1)        # (C, HW + 2*(W+1))

    taps = []
    for dy in (-1, 0, 1):
        for dx in (-1, 0, 1):
            s = dy * W + dx
            t = xp[:, pad + s:pad + s + HW]                # static lane slice
            # Top/bottom halo rows fall into the zero extension automatically;
            # only the left/right column wrap-around needs masking.
            if dx == -1:
                t = jnp.where(left_ok, t, jnp.zeros_like(t))
            elif dx == 1:
                t = jnp.where(right_ok, t, jnp.zeros_like(t))
            taps.append(t)
    patches = jnp.concatenate(taps, axis=0)                # (9*C_in, HW)
    # Single fused dot: M=C_out, K=9*C_in, N=H*W (lane dense).
    return jnp.dot(w_mat, patches, preferred_element_type=jnp.float32)


def resnet_kernel(x_ref, w1_ref, b1_ref, w2_ref, b2_ref, out_ref, *, H, W):
    # x_ref:   (1, C, H*W) bf16   lane-dense activations of one image
    # w*_ref:  (C, 9*C)    bf16   weights as (c_out, (ky*3+kx)*C + c_in)
    # b*_ref:  (C, 1)      f32
    # out_ref: (1, C, H*W) f32
    HW = H * W
    x = x_ref[0]                                           # (C, HW) bf16

    col = lax.broadcasted_iota(jnp.int32, (1, HW), 1) % W
    left_ok = col != 0
    right_ok = col != (W - 1)

    # conv1 + bias + ReLU (f32), back to bf16 for the second MXU pass.
    h = _conv3x3_one_dot(x, w1_ref[...], W, left_ok, right_ok)
    h = jnp.maximum(h + b1_ref[...], 0.0).astype(jnp.bfloat16)

    # conv2; bias + residual + final ReLU fused into one f32 elementwise pass.
    y = _conv3x3_one_dot(h, w2_ref[...], W, left_ok, right_ok)
    y = jnp.maximum(y + b2_ref[...] + x.astype(jnp.float32), 0.0)
    out_ref[0] = y.astype(out_ref.dtype)


def resnet_forward(x, w1, b1, w2, b2):
    """x: (N, C, H, W) f32 (NCHW); w*: (C, C, 3, 3) OIHW (PyTorch); b*: (C,)."""
    N, C, H, W = x.shape
    HW = H * W

    # All layout plumbing + bf16 casts live in the wrapper, not in the kernel.
    x_flat = x.reshape(N, C, HW).astype(jnp.bfloat16)

    def to_mat(w):  # OIHW -> (C_out, (ky*3 + kx)*C_in + c_in)
        return jnp.transpose(w, (0, 2, 3, 1)).reshape(C, 9 * C).astype(jnp.bfloat16)

    w1m, w2m = to_mat(w1), to_mat(w2)
    b1c = b1.astype(jnp.float32).reshape(C, 1)
    b2c = b2.astype(jnp.float32).reshape(C, 1)

    out = pl.pallas_call(
        functools.partial(resnet_kernel, H=H, W=W),
        out_shape=jax.ShapeDtypeStruct((N, C, HW), jnp.float32),
        grid_spec=pltpu.PrefetchScalarGridSpec(
            num_scalar_prefetch=0,
            grid=(N,),
            in_specs=[
                pl.BlockSpec((1, C, HW), lambda n: (n, 0, 0)),
                pl.BlockSpec((C, 9 * C), lambda n: (0, 0)),
                pl.BlockSpec((C, 1), lambda n: (0, 0)),
                pl.BlockSpec((C, 9 * C), lambda n: (0, 0)),
                pl.BlockSpec((C, 1), lambda n: (0, 0)),
            ],
            out_specs=pl.BlockSpec((1, C, HW), lambda n: (n, 0, 0)),
        ),
        compiler_params=pltpu.CompilerParams(
            dimension_semantics=("parallel",)),
    )(x_flat, w1m, b1c, w2m, b2c)
    return out.reshape(N, C, H, W)


def ref_forward(x, w1, b1, w2, b2):
    """Pure-JAX reference matching the PyTorch ResNet (act=ReLU, norm=None).

    Uses the same bf16-rounded matmul inputs (with f32 accumulation) as the
    kernel so the comparison is apples-to-apples.
    """
    C = x.shape[1]
    xb = x.astype(jnp.bfloat16).astype(jnp.float32)
    w1b = w1.astype(jnp.bfloat16).astype(jnp.float32)
    w2b = w2.astype(jnp.bfloat16).astype(jnp.float32)
    dn = lax.conv_dimension_numbers(x.shape, w1.shape, ("NCHW", "OIHW", "NCHW"))
    h = lax.conv_general_dilated(xb, w1b, (1, 1), "SAME", dimension_numbers=dn)
    h = jnp.maximum(h + b1.reshape(1, C, 1, 1), 0.0)
    h = h.astype(jnp.bfloat16).astype(jnp.float32)
    y = lax.conv_general_dilated(h, w2b, (1, 1), "SAME", dimension_numbers=dn)
    y = y + b2.reshape(1, C, 1, 1) + xb
    return jnp.maximum(y, 0.0)


if __name__ == "__main__":
    # Small shapes consistent with the module: batch=2, channels=4, spatial=16.
    N, C, H, W = 2, 4, 16, 16
    key = jax.random.PRNGKey(0)
    kx, kw1, kb1, kw2, kb2 = jax.random.split(key, 5)

    x = jax.random.normal(kx, (N, C, H, W), dtype=jnp.float32)
    # Deterministic synthetic parameters (PyTorch OIHW layout).
    w1 = jax.random.normal(kw1, (C, C, 3, 3), dtype=jnp.float32) * 0.1
    b1 = jax.random.normal(kb1, (C,), dtype=jnp.float32) * 0.1
    w2 = jax.random.normal(kw2, (C, C, 3, 3), dtype=jnp.float32) * 0.1
    b2 = jax.random.normal(kb2, (C,), dtype=jnp.float32) * 0.1

    out = jax.block_until_ready(resnet_forward(x, w1, b1, w2, b2))
    expected = ref_forward(x, w1, b1, w2, b2)

    assert out.shape == (N, C, H, W)
    max_err = float(jnp.max(jnp.abs(out - expected)))
    assert jnp.allclose(out, expected, atol=5e-3, rtol=5e-3), max_err
    print("KERNEL_OK")
</pallas_src>

<mosaic_0001>
module attributes {stable_mosaic.version = 11 : i64} {
  func.func @resnet_kernel(%arg0: i32, %arg1: memref<1x4x256xbf16, #tpu.memory_space<vmem>>, %arg2: memref<4x36xbf16, #tpu.memory_space<vmem>>, %arg3: memref<4x1xf32, #tpu.memory_space<vmem>>, %arg4: memref<4x36xbf16, #tpu.memory_space<vmem>>, %arg5: memref<4x1xf32, #tpu.memory_space<vmem>>, %arg6: memref<1x4x256xf32, #tpu.memory_space<vmem>>) attributes {dimension_semantics = [#tpu.dimension_semantics<parallel>], iteration_bounds = array<i64: 2>, scalar_prefetch = 0 : i64, scratch_operands = 0 : i64, tpu.core_type = #tpu.core_type<tc>, window_params = [{transform_indices = @transform_0, window_bounds = array<i64: 1, 4, 256>}, {pipeline_mode = #tpu.pipeline_mode<synchronous>, transform_indices = @transform_1, window_bounds = array<i64: 4, 36>}, {pipeline_mode = #tpu.pipeline_mode<synchronous>, transform_indices = @transform_2, window_bounds = array<i64: 4, 1>}, {pipeline_mode = #tpu.pipeline_mode<synchronous>, transform_indices = @transform_3, window_bounds = array<i64: 4, 36>}, {pipeline_mode = #tpu.pipeline_mode<synchronous>, transform_indices = @transform_4, window_bounds = array<i64: 4, 1>}, {transform_indices = @transform_5, window_bounds = array<i64: 1, 4, 256>}]} {
    %c0 = arith.constant 0 : index
    %c0_0 = arith.constant 0 : index
    %c0_1 = arith.constant 0 : index
    %0 = vector.load %arg1[%c0, %c0_0, %c0_1] : memref<1x4x256xbf16, #tpu.memory_space<vmem>>, vector<1x4x256xbf16>
    %1 = vector.shape_cast %0 : vector<1x4x256xbf16> to vector<4x256xbf16>
    %2 = tpu.iota {dimensions = array<i32: 1>} : vector<1x256xi32>
    %c16_i32 = arith.constant 16 : i32
    %c0_i32 = arith.constant 0 : i32
    %3 = arith.cmpi eq, %c16_i32, %c0_i32 : i32
    %c1_i32 = arith.constant 1 : i32
    %4 = arith.select %3, %c1_i32, %c16_i32 : i32
    %5 = vector.broadcast %4 : i32 to vector<1x256xi32>
    %6 = arith.remsi %2, %5 : vector<1x256xi32>
    %c0_i32_2 = arith.constant 0 : i32
    %7 = vector.broadcast %c0_i32_2 : i32 to vector<1x256xi32>
    %8 = arith.cmpi ne, %6, %7 : vector<1x256xi32>
    %c0_i32_3 = arith.constant 0 : i32
    %9 = vector.broadcast %c0_i32_3 : i32 to vector<1x256xi32>
    %10 = arith.cmpi slt, %6, %9 : vector<1x256xi32>
    %c0_i32_4 = arith.constant 0 : i32
    %11 = arith.cmpi slt, %4, %c0_i32_4 : i32
    %12 = vector.broadcast %11 : i1 to vector<1x256xi1>
    %13 = vector.broadcast %12 : vector<1x256xi1> to vector<1x256xi1>
    %14 = arith.xori %10, %13 : vector<1x256xi1>
    %15 = arith.andi %14, %8 : vector<1x256xi1>
    %16 = vector.broadcast %4 : i32 to vector<1x256xi32>
    %17 = arith.addi %6, %16 : vector<1x256xi32>
    %18 = arith.select %15, %17, %6 : vector<1x256xi1>, vector<1x256xi32>
    %c0_i32_5 = arith.constant 0 : i32
    %19 = vector.broadcast %c0_i32_5 : i32 to vector<1x256xi32>
    %20 = arith.cmpi ne, %18, %19 : vector<1x256xi32>
    %c15_i32 = arith.constant 15 : i32
    %21 = vector.broadcast %c15_i32 : i32 to vector<1x256xi32>
    %22 = arith.cmpi ne, %18, %21 : vector<1x256xi32>
    %c0_6 = arith.constant 0 : index
    %c0_7 = arith.constant 0 : index
    %23 = vector.load %arg2[%c0_6, %c0_7] : memref<4x36xbf16, #tpu.memory_space<vmem>>, vector<4x36xbf16>
    %cst = arith.constant 0.000000e+00 : bf16
    %24 = vector.broadcast %cst : bf16 to vector<4x17xbf16>
    %25 = tpu.concatenate %24, %1, %24 in 1 : vector<4x17xbf16>, vector<4x256xbf16>, vector<4x17xbf16> -> vector<4x290xbf16>
    %26 = vector.extract_strided_slice %25 {offsets = [0, 0], sizes = [4, 256], strides = [1, 1]} : vector<4x290xbf16> to vector<4x256xbf16>
    %cst_8 = arith.constant 0.000000e+00 : bf16
    %27 = vector.broadcast %cst_8 : bf16 to vector<4x256xbf16>
    %28 = vector.shape_cast %20 : vector<1x256xi1> to vector<1x256xi1>
    %29 = vector.broadcast %28 : vector<1x256xi1> to vector<4x256xi1>
    %30 = arith.select %29, %26, %27 : vector<4x256xi1>, vector<4x256xbf16>
    %31 = vector.extract_strided_slice %25 {offsets = [0, 1], sizes = [4, 256], strides = [1, 1]} : vector<4x290xbf16> to vector<4x256xbf16>
    %32 = vector.extract_strided_slice %25 {offsets = [0, 2], sizes = [4, 256], strides = [1, 1]} : vector<4x290xbf16> to vector<4x256xbf16>
    %cst_9 = arith.constant 0.000000e+00 : bf16
    %33 = vector.broadcast %cst_9 : bf16 to vector<4x256xbf16>
    %34 = vector.shape_cast %22 : vector<1x256xi1> to vector<1x256xi1>
    %35 = vector.broadcast %34 : vector<1x256xi1> to vector<4x256xi1>
    %36 = arith.select %35, %32, %33 : vector<4x256xi1>, vector<4x256xbf16>
    %37 = vector.extract_strided_slice %25 {offsets = [0, 16], sizes = [4, 256], strides = [1, 1]} : vector<4x290xbf16> to vector<4x256xbf16>
    %cst_10 = arith.constant 0.000000e+00 : bf16
    %38 = vector.broadcast %cst_10 : bf16 to vector<4x256xbf16>
    %39 = vector.shape_cast %20 : vector<1x256xi1> to vector<1x256xi1>
    %40 = vector.broadcast %39 : vector<1x256xi1> to vector<4x256xi1>
    %41 = arith.select %40, %37, %38 : vector<4x256xi1>, vector<4x256xbf16>
    %42 = vector.extract_strided_slice %25 {offsets = [0, 17], sizes = [4, 256], strides = [1, 1]} : vector<4x290xbf16> to vector<4x256xbf16>
    %43 = vector.extract_strided_slice %25 {offsets = [0, 18], sizes = [4, 256], strides = [1, 1]} : vector<4x290xbf16> to vector<4x256xbf16>
    %cst_11 = arith.constant 0.000000e+00 : bf16
    %44 = vector.broadcast %cst_11 : bf16 to vector<4x256xbf16>
    %45 = vector.shape_cast %22 : vector<1x256xi1> to vector<1x256xi1>
    %46 = vector.broadcast %45 : vector<1x256xi1> to vector<4x256xi1>
    %47 = arith.select %46, %43, %44 : vector<4x256xi1>, vector<4x256xbf16>
    %48 = vector.extract_strided_slice %25 {offsets = [0, 32], sizes = [4, 256], strides = [1, 1]} : vector<4x290xbf16> to vector<4x256xbf16>
    %cst_12 = arith.constant 0.000000e+00 : bf16
    %49 = vector.broadcast %cst_12 : bf16 to vector<4x256xbf16>
    %50 = vector.shape_cast %20 : vector<1x256xi1> to vector<1x256xi1>
    %51 = vector.broadcast %50 : vector<1x256xi1> to vector<4x256xi1>
    %52 = arith.select %51, %48, %49 : vector<4x256xi1>, vector<4x256xbf16>
    %53 = vector.extract_strided_slice %25 {offsets = [0, 33], sizes = [4, 256], strides = [1, 1]} : vector<4x290xbf16> to vector<4x256xbf16>
    %54 = vector.extract_strided_slice %25 {offsets = [0, 34], sizes = [4, 256], strides = [1, 1]} : vector<4x290xbf16> to vector<4x256xbf16>
    %cst_13 = arith.constant 0.000000e+00 : bf16
    %55 = vector.broadcast %cst_13 : bf16 to vector<4x256xbf16>
    %56 = vector.shape_cast %22 : vector<1x256xi1> to vector<1x256xi1>
    %57 = vector.broadcast %56 : vector<1x256xi1> to vector<4x256xi1>
    %58 = arith.select %57, %54, %55 : vector<4x256xi1>, vector<4x256xbf16>
    %59 = tpu.concatenate %30, %31, %36, %41, %42, %47, %52, %53, %58 in 0 : vector<4x256xbf16>, vector<4x256xbf16>, vector<4x256xbf16>, vector<4x256xbf16>, vector<4x256xbf16>, vector<4x256xbf16>, vector<4x256xbf16>, vector<4x256xbf16>, vector<4x256xbf16> -> vector<36x256xbf16>
    %cst_14 = arith.constant dense<0.000000e+00> : vector<4x256xf32>
    %60 = tpu.matmul %23, %59, %cst_14 {dimension_numbers = #tpu.dot_dimension_numbers<[1], [0], [0], [1], [0, 0, 1, 1], [], []>} : vector<4x36xbf16>, vector<36x256xbf16>, vector<4x256xf32> -> vector<4x256xf32>
    %c0_15 = arith.constant 0 : index
    %c0_16 = arith.constant 0 : index
    %61 = vector.load %arg3[%c0_15, %c0_16] : memref<4x1xf32, #tpu.memory_space<vmem>>, vector<4x1xf32>
    %62 = vector.broadcast %61 : vector<4x1xf32> to vector<4x256xf32>
    %63 = arith.addf %60, %62 : vector<4x256xf32>
    %cst_17 = arith.constant 0.000000e+00 : f32
    %64 = vector.broadcast %cst_17 : f32 to vector<4x256xf32>
    %65 = arith.maximumf %63, %64 : vector<4x256xf32>
    %66 = arith.truncf %65 : vector<4x256xf32> to vector<4x256xbf16>
    %c0_18 = arith.constant 0 : index
    %c0_19 = arith.constant 0 : index
    %67 = vector.load %arg4[%c0_18, %c0_19] : memref<4x36xbf16, #tpu.memory_space<vmem>>, vector<4x36xbf16>
    %cst_20 = arith.constant 0.000000e+00 : bf16
    %68 = vector.broadcast %cst_20 : bf16 to vector<4x17xbf16>
    %69 = tpu.concatenate %68, %66, %68 in 1 : vector<4x17xbf16>, vector<4x256xbf16>, vector<4x17xbf16> -> vector<4x290xbf16>
    %70 = vector.extract_strided_slice %69 {offsets = [0, 0], sizes = [4, 256], strides = [1, 1]} : vector<4x290xbf16> to vector<4x256xbf16>
    %cst_21 = arith.constant 0.000000e+00 : bf16
    %71 = vector.broadcast %cst_21 : bf16 to vector<4x256xbf16>
    %72 = vector.shape_cast %20 : vector<1x256xi1> to vector<1x256xi1>
    %73 = vector.broadcast %72 : vector<1x256xi1> to vector<4x256xi1>
    %74 = arith.select %73, %70, %71 : vector<4x256xi1>, vector<4x256xbf16>
    %75 = vector.extract_strided_slice %69 {offsets = [0, 1], sizes = [4, 256], strides = [1, 1]} : vector<4x290xbf16> to vector<4x256xbf16>
    %76 = vector.extract_strided_slice %69 {offsets = [0, 2], sizes = [4, 256], strides = [1, 1]} : vector<4x290xbf16> to vector<4x256xbf16>
    %cst_22 = arith.constant 0.000000e+00 : bf16
    %77 = vector.broadcast %cst_22 : bf16 to vector<4x256xbf16>
    %78 = vector.shape_cast %22 : vector<1x256xi1> to vector<1x256xi1>
    %79 = vector.broadcast %78 : vector<1x256xi1> to vector<4x256xi1>
    %80 = arith.select %79, %76, %77 : vector<4x256xi1>, vector<4x256xbf16>
    %81 = vector.extract_strided_slice %69 {offsets = [0, 16], sizes = [4, 256], strides = [1, 1]} : vector<4x290xbf16> to vector<4x256xbf16>
    %cst_23 = arith.constant 0.000000e+00 : bf16
    %82 = vector.broadcast %cst_23 : bf16 to vector<4x256xbf16>
    %83 = vector.shape_cast %20 : vector<1x256xi1> to vector<1x256xi1>
    %84 = vector.broadcast %83 : vector<1x256xi1> to vector<4x256xi1>
    %85 = arith.select %84, %81, %82 : vector<4x256xi1>, vector<4x256xbf16>
    %86 = vector.extract_strided_slice %69 {offsets = [0, 17], sizes = [4, 256], strides = [1, 1]} : vector<4x290xbf16> to vector<4x256xbf16>
    %87 = vector.extract_strided_slice %69 {offsets = [0, 18], sizes = [4, 256], strides = [1, 1]} : vector<4x290xbf16> to vector<4x256xbf16>
    %cst_24 = arith.constant 0.000000e+00 : bf16
    %88 = vector.broadcast %cst_24 : bf16 to vector<4x256xbf16>
    %89 = vector.shape_cast %22 : vector<1x256xi1> to vector<1x256xi1>
    %90 = vector.broadcast %89 : vector<1x256xi1> to vector<4x256xi1>
    %91 = arith.select %90, %87, %88 : vector<4x256xi1>, vector<4x256xbf16>
    %92 = vector.extract_strided_slice %69 {offsets = [0, 32], sizes = [4, 256], strides = [1, 1]} : vector<4x290xbf16> to vector<4x256xbf16>
    %cst_25 = arith.constant 0.000000e+00 : bf16
    %93 = vector.broadcast %cst_25 : bf16 to vector<4x256xbf16>
    %94 = vector.shape_cast %20 : vector<1x256xi1> to vector<1x256xi1>
    %95 = vector.broadcast %94 : vector<1x256xi1> to vector<4x256xi1>
    %96 = arith.select %95, %92, %93 : vector<4x256xi1>, vector<4x256xbf16>
    %97 = vector.extract_strided_slice %69 {offsets = [0, 33], sizes = [4, 256], strides = [1, 1]} : vector<4x290xbf16> to vector<4x256xbf16>
    %98 = vector.extract_strided_slice %69 {offsets = [0, 34], sizes = [4, 256], strides = [1, 1]} : vector<4x290xbf16> to vector<4x256xbf16>
    %cst_26 = arith.constant 0.000000e+00 : bf16
    %99 = vector.broadcast %cst_26 : bf16 to vector<4x256xbf16>
    %100 = vector.shape_cast %22 : vector<1x256xi1> to vector<1x256xi1>
    %101 = vector.broadcast %100 : vector<1x256xi1> to vector<4x256xi1>
    %102 = arith.select %101, %98, %99 : vector<4x256xi1>, vector<4x256xbf16>
    %103 = tpu.concatenate %74, %75, %80, %85, %86, %91, %96, %97, %102 in 0 : vector<4x256xbf16>, vector<4x256xbf16>, vector<4x256xbf16>, vector<4x256xbf16>, vector<4x256xbf16>, vector<4x256xbf16>, vector<4x256xbf16>, vector<4x256xbf16>, vector<4x256xbf16> -> vector<36x256xbf16>
    %cst_27 = arith.constant dense<0.000000e+00> : vector<4x256xf32>
    %104 = tpu.matmul %67, %103, %cst_27 {dimension_numbers = #tpu.dot_dimension_numbers<[1], [0], [0], [1], [0, 0, 1, 1], [], []>} : vector<4x36xbf16>, vector<36x256xbf16>, vector<4x256xf32> -> vector<4x256xf32>
    %c0_28 = arith.constant 0 : index
    %c0_29 = arith.constant 0 : index
    %105 = vector.load %arg5[%c0_28, %c0_29] : memref<4x1xf32, #tpu.memory_space<vmem>>, vector<4x1xf32>
    %106 = vector.broadcast %105 : vector<4x1xf32> to vector<4x256xf32>
    %107 = arith.addf %104, %106 : vector<4x256xf32>
    %108 = arith.extf %1 : vector<4x256xbf16> to vector<4x256xf32>
    %109 = arith.addf %107, %108 : vector<4x256xf32>
    %cst_30 = arith.constant 0.000000e+00 : f32
    %110 = vector.broadcast %cst_30 : f32 to vector<4x256xf32>
    %111 = arith.maximumf %109, %110 : vector<4x256xf32>
    %c0_31 = arith.constant 0 : index
    %c0_32 = arith.constant 0 : index
    %c0_33 = arith.constant 0 : index
    %112 = vector.load %arg6[%c0_31, %c0_32, %c0_33] : memref<1x4x256xf32, #tpu.memory_space<vmem>>, vector<1x4x256xf32>
    %113 = vector.shape_cast %112 : vector<1x4x256xf32> to vector<4x256xf32>
    %114 = vector.shape_cast %111 : vector<4x256xf32> to vector<1x4x256xf32>
    tpu.vector_store %arg6[%c0_31, %c0_32, %c0_33], %114 {strides = array<i32>} : memref<1x4x256xf32, #tpu.memory_space<vmem>>, vector<1x4x256xf32>,
    return
  }
  func.func @transform_0(%arg0: i32) -> (i32, i32, i32) {
    %c0_i32 = arith.constant 0 : i32
    %c0_i32_0 = arith.constant 0 : i32
    %c0_i32_1 = arith.constant 0 : i32
    return %arg0, %c0_i32, %c0_i32_0 : i32, i32, i32
  }
  func.func @transform_1(%arg0: i32) -> (i32, i32) {
    %c0_i32 = arith.constant 0 : i32
    %c0_i32_0 = arith.constant 0 : i32
    %c0_i32_1 = arith.constant 0 : i32
    return %c0_i32, %c0_i32_0 : i32, i32
  }
  func.func @transform_2(%arg0: i32) -> (i32, i32) {
    %c0_i32 = arith.constant 0 : i32
    %c0_i32_0 = arith.constant 0 : i32
    %c0_i32_1 = arith.constant 0 : i32
    return %c0_i32, %c0_i32_0 : i32, i32
  }
  func.func @transform_3(%arg0: i32) -> (i32, i32) {
    %c0_i32 = arith.constant 0 : i32
    %c0_i32_0 = arith.constant 0 : i32
    %c0_i32_1 = arith.constant 0 : i32
    return %c0_i32, %c0_i32_0 : i32, i32
  }
  func.func @transform_4(%arg0: i32) -> (i32, i32) {
    %c0_i32 = arith.constant 0 : i32
    %c0_i32_0 = arith.constant 0 : i32
    %c0_i32_1 = arith.constant 0 : i32
    return %c0_i32, %c0_i32_0 : i32, i32
  }
  func.func @transform_5(%arg0: i32) -> (i32, i32, i32) {
    %c0_i32 = arith.constant 0 : i32
    %c0_i32_0 = arith.constant 0 : i32
    %c0_i32_1 = arith.constant 0 : i32
    return %arg0, %c0_i32, %c0_i32_0 : i32, i32, i32
  }
}

</mosaic_0001>

<llo_original>
// kernel: tpu_custom_call.1
$region0: #{tpu_custom_call.1}
  #allocation0 [shape = 'u32[]', space=smem, size = 0x4, offset = 0x4, fixed_abs, tag = 'smem constant byte address 0x4 - core index']
  #allocation1 [shape = 'u32[144,128]{1,0:T(1,128)}', space=vmem, size = 0x12000, scoped, tag = 'internal scratch']
  %s0 = inlined_call_operand.vmem [shape: bf16[2,4,256], index: 0, kind: input, shape index: {}]
  %s1 = inlined_call_operand.vmem [shape: bf16[4,36], index: 1, kind: input, shape index: {}]
  %s2 = inlined_call_operand.vmem [shape: f32[4,1], index: 2, kind: input, shape index: {}]
  %s3 = inlined_call_operand.vmem [shape: bf16[4,36], index: 3, kind: input, shape index: {}]
  %s4 = inlined_call_operand.vmem [shape: f32[4,1], index: 4, kind: input, shape index: {}]
  %s5 = inlined_call_operand.hbm [shape: f32[2,4,256], index: 5, kind: output, shape index: {}]
  %s6 = sld [smem:[#allocation0]]
  $region53: #{tpu_custom_call.1} parent=0
    _
  %s8 = ssub.s32 1, %s6
  %s9 = scalar_select 0, %s8, %s6
  $region1: #{tpu_custom_call.1} parent=0
    #allocation2 [shape = 'u8[8192]{0}', space=vmem, size = 0x2000, scoped, tag = 'output window, operand 0']
    #allocation3 [shape = 's32[2]{0}', space=sflag, size = 0x8, scoped, tag = 'scoped memory for tpu_custom_call.1']
    %10 = vsyncpa [#allocation3], 0
    %s11 = scalar_lea.sflag [#allocation3], 1
    %12 = vsyncpa %s11, 0
    loop: start=0, step=1, limit=4
    $region2: #{tpu_custom_call.1} parent=1 // loop_pre_header
      _
    $region3: #{tpu_custom_call.1} parent=1 // loop_header
      %s14 = sphi 0, %s18
      %p15 = scmp.ge.s32.totalorder %s14, 4
      %s24 = sphi 0, %s26
      %s27 = sphi 0, %s24
      %s28 = sphi 0, %s27
      %s44 = sphi 0, %s28
      %s48 = sphi 0, %s48
      %s50 = sphi 0, %s48
      %s51 = sphi 0, %s50
      %s65 = sphi 0, %s51
      %s69 = sphi 0, %s69
      %s71 = sphi 0, %s69
      %s72 = sphi 0, %s71
      %s86 = sphi 0, %s72
      %s90 = sphi 0, %s90
      %s92 = sphi 0, %s90
      %s93 = sphi 0, %s92
      %s107 = sphi 0, %s93
      %s111 = sphi 0, %s111
      %s113 = sphi 0, %s111
      %s114 = sphi 0, %s113
      %s128 = sphi 0, %s114
      %s134 = sphi 0, %s136
      %s137 = sphi 0, %s134
      %s138 = sphi 0, %s137
      %s154 = sphi 0, %s138
    $region4: #{tpu_custom_call.1} parent=1 // loop_header_branch
      %17 = sbr.rel (%p15) target = $region8
    $region5: #{tpu_custom_call.1} parent=1 // loop_body
      %s19 = ssub.s32 %s14, 1
      %s20 = ssub.s32 %s14, 2
      %s21 = sadd.s32 %s14, 1
      %s22 = ssub.s32 %s14, %s21
      %p23 = scmp.eq.s32.totalorder %s22, 0
      %s25 = sadd.s32 %s24, 1
      %s26 = scalar_select %p23, %s24, %s25
      %p29 = pneg %p23
      %p30 = scmp.eq.s32.totalorder %s14, 1
      %p31 = por %p29, %p30
      %p32 = scmp.ne.s32.totalorder %s24, %s27
      %p33 = scmp.eq.s32.totalorder %s14, 0
      %p34 = por %p32, %p33
      %p35 = scmp.ne.s32.totalorder %s24, %s27
      %p36 = scmp.eq.s32.totalorder %s19, 1
      %p37 = por %p35, %p36
      %p38 = scmp.ne.s32.totalorder %s27, %s28
      %p39 = scmp.eq.s32.totalorder %s19, 0
      %p40 = por %p38, %p39
      %p41 = scmp.ne.s32.totalorder %s27, %s28
      %p42 = scmp.eq.s32.totalorder %s20, 1
      %p43 = por %p41, %p42
      %p45 = scmp.ne.s32.totalorder %s28, %s44
      %p46 = scmp.eq.s32.totalorder %s20, 0
      %p47 = por %p45, %p46
      %s49 = sadd.s32 %s48, 1
      %p52 = scmp.eq.s32.totalorder %s14, 1
      %p53 = scmp.ne.s32.totalorder %s48, %s50
      %p54 = scmp.eq.s32.totalorder %s14, 0
      %p55 = por %p53, %p54
      %p56 = scmp.ne.s32.totalorder %s48, %s50
      %p57 = scmp.eq.s32.totalorder %s19, 1
      %p58 = por %p56, %p57
      %p59 = scmp.ne.s32.totalorder %s50, %s51
      %p60 = scmp.eq.s32.totalorder %s19, 0
      %p61 = por %p59, %p60
      %p62 = scmp.ne.s32.totalorder %s50, %s51
      %p63 = scmp.eq.s32.totalorder %s20, 1
      %p64 = por %p62, %p63
      %p66 = scmp.ne.s32.totalorder %s51, %s65
      %p67 = scmp.eq.s32.totalorder %s20, 0
      %p68 = por %p66, %p67
      %s70 = sadd.s32 %s69, 1
      %p73 = scmp.eq.s32.totalorder %s14, 1
      %p74 = scmp.ne.s32.totalorder %s69, %s71
      %p75 = scmp.eq.s32.totalorder %s14, 0
      %p76 = por %p74, %p75
      %p77 = scmp.ne.s32.totalorder %s69, %s71
      %p78 = scmp.eq.s32.totalorder %s19, 1
      %p79 = por %p77, %p78
      %p80 = scmp.ne.s32.totalorder %s71, %s72
      %p81 = scmp.eq.s32.totalorder %s19, 0
      %p82 = por %p80, %p81
      %p83 = scmp.ne.s32.totalorder %s71, %s72
      %p84 = scmp.eq.s32.totalorder %s20, 1
      %p85 = por %p83, %p84
      %p87 = scmp.ne.s32.totalorder %s72, %s86
      %p88 = scmp.eq.s32.totalorder %s20, 0
      %p89 = por %p87, %p88
      %s91 = sadd.s32 %s90, 1
      %p94 = scmp.eq.s32.totalorder %s14, 1
      %p95 = scmp.ne.s32.totalorder %s90, %s92
      %p96 = scmp.eq.s32.totalorder %s14, 0
      %p97 = por %p95, %p96
      %p98 = scmp.ne.s32.totalorder %s90, %s92
      %p99 = scmp.eq.s32.totalorder %s19, 1
      %p100 = por %p98, %p99
      %p101 = scmp.ne.s32.totalorder %s92, %s93
      %p102 = scmp.eq.s32.totalorder %s19, 0
      %p103 = por %p101, %p102
      %p104 = scmp.ne.s32.totalorder %s92, %s93
      %p105 = scmp.eq.s32.totalorder %s20, 1
      %p106 = por %p104, %p105
      %p108 = scmp.ne.s32.totalorder %s93, %s107
      %p109 = scmp.eq.s32.totalorder %s20, 0
      %p110 = por %p108, %p109
      %s112 = sadd.s32 %s111, 1
      %p115 = scmp.eq.s32.totalorder %s14, 1
      %p116 = scmp.ne.s32.totalorder %s111, %s113
      %p117 = scmp.eq.s32.totalorder %s14, 0
      %p118 = por %p116, %p117
      %p119 = scmp.ne.s32.totalorder %s111, %s113
      %p120 = scmp.eq.s32.totalorder %s19, 1
      %p121 = por %p119, %p120
      %p122 = scmp.ne.s32.totalorder %s113, %s114
      %p123 = scmp.eq.s32.totalorder %s19, 0
      %p124 = por %p122, %p123
      %p125 = scmp.ne.s32.totalorder %s113, %s114
      %p126 = scmp.eq.s32.totalorder %s20, 1
      %p127 = por %p125, %p126
      %p129 = scmp.ne.s32.totalorder %s114, %s128
      %p130 = scmp.eq.s32.totalorder %s20, 0
      %p131 = por %p129, %p130
      %s132 = ssub.s32 %s14, %s21
      %p133 = scmp.eq.s32.totalorder %s132, 0
      %s135 = sadd.s32 %s134, 1
      %s136 = scalar_select %p133, %s134, %s135
      %p139 = pneg %p133
      %p140 = scmp.eq.s32.totalorder %s14, 1
      %p141 = por %p139, %p140
      %p142 = scmp.ne.s32.totalorder %s134, %s137
      %p143 = scmp.eq.s32.totalorder %s14, 0
      %p144 = por %p142, %p143
      %p145 = scmp.ne.s32.totalorder %s134, %s137
      %p146 = scmp.eq.s32.totalorder %s19, 1
      %p147 = por %p145, %p146
      %p148 = scmp.ne.s32.totalorder %s137, %s138
      %p149 = scmp.eq.s32.totalorder %s19, 0
      %p150 = por %p148, %p149
      %p151 = scmp.ne.s32.totalorder %s137, %s138
      %p152 = scmp.eq.s32.totalorder %s20, 1
      %p153 = por %p151, %p152
      %p155 = scmp.ne.s32.totalorder %s138, %s154
      %p156 = scmp.eq.s32.totalorder %s20, 0
      %p157 = por %p155, %p156
      %p158 = scmp.le.s32.totalorder 1, %s14
      %p159 = scmp.lt.s32.totalorder %s14, 3
      %p160 = pnand %p158, %p159
      %p161 = pneg %p160
      // Predicated region
      $region9: #{tpu_custom_call.1} parent=5 // pred_check
        _
      $region10: #{tpu_custom_call.1} parent=5 // pred_check_branch
        %163 = sbr.rel (%p160) target = $region12
      $region11: #{tpu_custom_call.1} parent=5 // pred_region
        %s164 = ssub.s32 %s14, 1
        // Predicated region
        $region13: #{tpu_custom_call.1} parent=11 // pred_check
          %p165 = pneg %p61
        $region14: #{tpu_custom_call.1} parent=11 // pred_check_branch
          %167 = sbr.rel (%p165) target = $region16
        $region15: #{tpu_custom_call.1} parent=11 // pred_region
          _
        $region16: #{tpu_custom_call.1} parent=11 // pred_fallthru
          _
        // Predicated region
        $region17: #{tpu_custom_call.1} parent=11 // pred_check
          %p168 = pneg %p82
        $region18: #{tpu_custom_call.1} parent=11 // pred_check_branch
          %170 = sbr.rel (%p168) target = $region20
        $region19: #{tpu_custom_call.1} parent=11 // pred_region
          _
        $region20: #{tpu_custom_call.1} parent=11 // pred_fallthru
          _
        // Predicated region
        $region21: #{tpu_custom_call.1} parent=11 // pred_check
          %p171 = pneg %p103
        $region22: #{tpu_custom_call.1} parent=11 // pred_check_branch
          %173 = sbr.rel (%p171) target = $region24
        $region23: #{tpu_custom_call.1} parent=11 // pred_region
          _
        $region24: #{tpu_custom_call.1} parent=11 // pred_fallthru
          _
        // Predicated region
        $region25: #{tpu_custom_call.1} parent=11 // pred_check
          %p174 = pneg %p124
        $region26: #{tpu_custom_call.1} parent=11 // pred_check_branch
          %176 = sbr.rel (%p174) target = $region28
        $region27: #{tpu_custom_call.1} parent=11 // pred_region
          _
        $region28: #{tpu_custom_call.1} parent=11 // pred_fallthru
          _
      $region12: #{tpu_custom_call.1} parent=5 // pred_fallthru
        _
      %p177 = scmp.lt.s32.totalorder %s14, 2
      // Predicated region
      $region29: #{tpu_custom_call.1} parent=5 // pred_check
        %p178 = pneg %p177
      $region30: #{tpu_custom_call.1} parent=5 // pred_check_branch
        %180 = sbr.rel (%p178) target = $region32
      $region31: #{tpu_custom_call.1} parent=5 // pred_region
        // Predicated region
        $region33: #{tpu_custom_call.1} parent=31 // pred_check
          %p181 = pneg %p34
        $region34: #{tpu_custom_call.1} parent=31 // pred_check_branch
          %183 = sbr.rel (%p181) target = $region36
        $region35: #{tpu_custom_call.1} parent=31 // pred_region
          %p184 = scmp.lt.s32.totalorder %s14, 1
          %s185 = scalar_select %p184, %s14, 1
          %s186 = smul.addr %s185, 2
          %s187 = smul.addr %s186, 2
          %s188 = scalar_lea.vmem %s0, %s187
        $region36: #{tpu_custom_call.1} parent=31 // pred_fallthru
          _
      $region32: #{tpu_custom_call.1} parent=5 // pred_fallthru
        _
      %p189 = scmp.le.s32.totalorder 1, %s14
      %p190 = scmp.lt.s32.totalorder %s14, 3
      %p191 = pnand %p189, %p190
      %p192 = pneg %p191
      // Predicated region
      $region37: #{tpu_custom_call.1} parent=5 // pred_check
        _
      $region38: #{tpu_custom_call.1} parent=5 // pred_check_branch
        %194 = sbr.rel (%p191) target = $region40
      $region39: #{tpu_custom_call.1} parent=5 // pred_region
        %s195 = ssub.s32 %s14, 1
        %p196 = scmp.lt.s32.totalorder %s19, 1
        %s197 = scalar_select %p196, %s19, 1
        %s198 = smul.addr %s197, 2
        %s199 = smul.addr %s198, 2
        %s200 = scalar_lea.vmem %s0, %s199
        %p201 = pneg %p40
        %p202 = pneg %p37
        %p203 = pneg %p61
        %p204 = pneg %p58
        %p205 = pneg %p82
        %p206 = pneg %p79
        %p207 = pneg %p103
        %p208 = pneg %p100
        %p209 = pneg %p124
        %p210 = pneg %p121
        %p211 = pneg %p150
        %p212 = pneg %p147
        %s213 = sand.u32 %s137, 1
        %s214 = scalar_lea.sflag [#allocation3], %s213
        %s215 = sand.u32 %s137, 1
        %s216 = smul.addr %s215, 8
        %s217 = scalar_lea.vmem [#allocation2], %s216
        %p218 = scmp.lt.s32.totalorder %s19, 1
        %s219 = scalar_select %p218, %s19, 1
        %s220 = smul.addr %s219, 2
        %s221 = smul.addr %s220, 2
        %s222 = scalar_lea.vmem %s0, %s221
        %v226 = vld [vmem:[%s222] sm:$0xf]
        %v227 = vlaneseq
        %v228 = vand.u32 %v227, 127
        %v229 = vadd.s32 %v228, 128
        %vm230 = vcmp.lt.s32.totalorder %v228, 0
        %v231 = vsub.s32 0, %v228
        %v232 = vsel %vm230, %v231, %v228
        %v233 = vshrl.u32 %v232, 4
        %v234 = vand.u32 %v232, 15
        %v235 = vsub.s32 0, %v234
        %v236 = vsel %vm230, %v235, %v234
        %vm237 = vcmp.lt.s32.totalorder %v229, 0
        %v238 = vsub.s32 0, %v229
        %v239 = vsel %vm237, %v238, %v229
        %v240 = vshrl.u32 %v239, 4
        %v241 = vand.u32 %v239, 15
        %v242 = vsub.s32 0, %v241
        %v243 = vsel %vm237, %v242, %v241
        %vm244 = vcmp.ne.s32.totalorder %v236, 0
        %vm245 = vcmp.ne.s32.totalorder %v243, 0
        %vm246 = vcmp.lt.s32.totalorder %v236, 0
        %vm247 = vcmp.lt.s32.totalorder %v243, 0
        %vm248 = vmand %vm246, %vm244
        %vm249 = vmand %vm247, %vm245
        %v250 = vadd.s32 %v236, 16
        %v251 = vadd.s32 %v243, 16
        %v252 = vsel %vm248, %v250, %v236
        %v253 = vsel %vm249, %v251, %v243
        %vm254 = vcmp.ne.s32.totalorder %v252, 0
        %vm255 = vcmp.ne.s32.totalorder %v253, 0
        %vm256 = vcmp.ne.s32.totalorder %v252, 15
        %vm257 = vcmp.ne.s32.totalorder %v253, 15
        %v258 = vld [vmem:[%s1] sm:$0x3]
        %v261 = vunpack.c.l.s4 1983009808
        %v262 = vunpack.c.0.s8 %v261
        %v263 = vlaneseq
        %v264 = vshrl.u32 %v263, 7
        %v265 = vsub.s32 %v262, %v264
        %v266 = vrot.slane %v226, %v265
        %v267 = vcombine.high %v266, %v266
        %268 = vrot.lane.b32.xlu0 %v266, 17
        %v269 = vpop.permute.xlu0 %268
        %270 = vrot.lane.b32.xlu0 %v267, 17
        %v271 = vpop.permute.xlu0 %270
        %vm272 = vcmask 138240
        %v273 = vsel %vm272, %v269, %v271
        %vm275 = vcmask 138240
        %v278 = vsel %vm275, 0, %v269
        %v281 = vsel %vm275, %v271, 0
        %v283 = vsel %vm254, 1, 0
        %v284 = vsel %vm255, 1, 0
        %vm285 = vcmp.eq.s32.totalorder %v283, 1
        %vm286 = vcmp.eq.s32.totalorder %v284, 1
        %vm287 = vmpackc.low %vm286, %vm285
        %v288 = vsel %vm287, 65537, 0
        %v289 = vlaneseq
        %v290 = vshrl.u32 %v289, 7
        %v291 = vsub.s32 0, %v290
        %v292 = vrot.slane %v288, %v291
        %v293 = vlaneseq
        %v294 = vshrl.u32 %v293, 7
        %v295 = vsub.s32 4, %v294
        %v296 = vrot.slane %v288, %v295
        %vm297 = vcmp.ne.s16.totalorder %v292, 0
        %vm298 = vcmp.ne.s16.totalorder %v296, 0
        %v299 = vsel %vm297, %v278, 0
        %v300 = vsel %vm298, %v273, 0
        %v301 = vsel %vm256, 1, 0
        %v302 = vsel %vm257, 1, 0
        %vm303 = vcmp.eq.s32.totalorder %v301, 1
        %vm304 = vcmp.eq.s32.totalorder %v302, 1
        %vm305 = vmpackc.low %vm304, %vm303
        %v306 = vsel %vm305, 65537, 0
        %v307 = vlaneseq
        %v308 = vshrl.u32 %v307, 7
        %v309 = vsub.s32 0, %v308
        %v310 = vrot.slane %v306, %v309
        %v311 = vlaneseq
        %v312 = vshrl.u32 %v311, 7
        %v313 = vsub.s32 4, %v312
        %v314 = vrot.slane %v306, %v313
        %315 = vrot.lane.b32.xlu0 %v310, 2
        %v316 = vpop.permute.xlu0 %315
        %317 = vrot.lane.b32.xlu0 %v314, 2
        %v318 = vpop.permute.xlu0 %317
        %vm319 = vcmask 15360
        %v320 = vsel %vm319, %v316, %v318
        %vm321 = vcmp.ne.s16.totalorder %v316, 0
        %vm322 = vcmp.ne.s16.totalorder %v320, 0
        %vm323 = vcmp.ne.s16.totalorder %v318, 0
        %v324 = vsel %vm321, %v278, 0
        %v325 = vsel %vm322, %v273, 0
        %v326 = vsel %vm323, %v281, 0
        %327 = vrot.lane.b32.xlu0 %v292, 16
        %v328 = vpop.permute.xlu0 %327
        %329 = vrot.lane.b32.xlu0 %v296, 16
        %v330 = vpop.permute.xlu0 %329
        %vm331 = vcmask 130048
        %v332 = vsel %vm331, %v328, %v330
        %vm333 = vcmp.ne.s16.totalorder %v328, 0
        %vm334 = vcmp.ne.s16.totalorder %v332, 0
        %vm335 = vcmp.ne.s16.totalorder %v330, 0
        %v336 = vsel %vm333, %v278, 0
        %v337 = vsel %vm334, %v273, 0
        %v338 = vsel %vm335, %v281, 0
        %339 = vrot.lane.b32.xlu0 %v310, 18
        %v340 = vpop.permute.xlu0 %339
        %341 = vrot.lane.b32.xlu0 %v314, 18
        %v342 = vpop.permute.xlu0 %341
        %vm343 = vcmask 146432
        %v344 = vsel %vm343, %v340, %v342
        %vm345 = vcmp.ne.s16.totalorder %v340, 0
        %vm346 = vcmp.ne.s16.totalorder %v344, 0
        %vm347 = vcmp.ne.s16.totalorder %v342, 0
        %v348 = vsel %vm345, %v278, 0
        %v349 = vsel %vm346, %v273, 0
        %v350 = vsel %vm347, %v281, 0
        %351 = vrot.lane.b32.xlu0 %v292, 32
        %v352 = vpop.permute.xlu0 %351
        %353 = vrot.lane.b32.xlu0 %v296, 32
        %v354 = vpop.permute.xlu0 %353
        %vm355 = vcmask 261120
        %v356 = vsel %vm355, %v352, %v354
        %vm357 = vcmp.ne.s16.totalorder %v352, 0
        %vm358 = vcmp.ne.s16.totalorder %v356, 0
        %vm359 = vcmp.ne.s16.totalorder %v354, 0
        %v360 = vsel %vm357, %v278, 0
        %v361 = vsel %vm358, %v273, 0
        %v362 = vsel %vm359, %v281, 0
        %363 = vrot.lane.b32.xlu0 %v310, 34
        %v364 = vpop.permute.xlu0 %363
        %365 = vrot.lane.b32.xlu0 %v314, 34
        %v366 = vpop.permute.xlu0 %365
        %vm367 = vcmask 277504
        %v368 = vsel %vm367, %v364, %v366
        %vm369 = vcmp.ne.s16.totalorder %v364, 0
        %vm370 = vcmp.ne.s16.totalorder %v368, 0
        %vm371 = vcmp.ne.s16.totalorder %v366, 0
        %v372 = vsel %vm369, %v278, 0
        %v373 = vsel %vm370, %v273, 0
        %v374 = vsel %vm371, %v281, 0
        %v377 = vrot.slane %v278, 6
        %v378 = vrot.slane %v273, 6
        %v379 = vrot.slane %v281, 6
        %380 = vrot.lane.b32.xlu0 %v377, 127
        %v381 = vpop.permute.xlu0 %380
        %382 = vrot.lane.b32.xlu0 %v378, 127
        %v383 = vpop.permute.xlu0 %382
        %384 = vrot.lane.b32.xlu0 %v379, 127
        %v385 = vpop.permute.xlu0 %384
        %vm386 = vcmask 1039360
        %v387 = vsel %vm386, %v381, %v383
        %v388 = vsel %vm386, %v383, %v385
        %v392 = vrot.slane %v324, 4
        %v393 = vrot.slane %v325, 4
        %v394 = vrot.slane %v326, 4
        %395 = vrot.lane.b32.xlu0 %v392, 126
        %v396 = vpop.permute.xlu0 %395
        %397 = vrot.lane.b32.xlu0 %v393, 126
        %v398 = vpop.permute.xlu0 %397
        %399 = vrot.lane.b32.xlu0 %v394, 126
        %v400 = vpop.permute.xlu0 %399
        %vm401 = vcmask 1031168
        %v402 = vsel %vm401, %v396, %v398
        %v403 = vsel %vm401, %v398, %v400
        %v407 = vrot.slane %v336, 2
        %v408 = vrot.slane %v337, 2
        %v409 = vrot.slane %v338, 2
        %410 = vrot.lane.b32.xlu0 %v407, 112
        %v411 = vpop.permute.xlu0 %410
        %412 = vrot.lane.b32.xlu0 %v408, 112
        %v413 = vpop.permute.xlu0 %412
        %414 = vrot.lane.b32.xlu0 %v409, 112
        %v415 = vpop.permute.xlu0 %414
        %vm416 = vcmask 916480
        %v417 = vsel %vm416, %v411, %v413
        %v418 = vsel %vm416, %v413, %v415
        %419 = vrot.lane.b32.xlu0 %v278, 111
        %v420 = vpop.permute.xlu0 %419
        %421 = vrot.lane.b32.xlu0 %v273, 111
        %v422 = vpop.permute.xlu0 %421
        %423 = vrot.lane.b32.xlu0 %v281, 111
        %v424 = vpop.permute.xlu0 %423
        %vm425 = vcmask 908288
        %v426 = vsel %vm425, %v420, %v422
        %v427 = vsel %vm425, %v422, %v424
        %v431 = vrot.slane %v348, 6
        %v432 = vrot.slane %v349, 6
        %v433 = vrot.slane %v350, 6
        %434 = vrot.lane.b32.xlu0 %v431, 110
        %v435 = vpop.permute.xlu0 %434
        %436 = vrot.lane.b32.xlu0 %v432, 110
        %v437 = vpop.permute.xlu0 %436
        %438 = vrot.lane.b32.xlu0 %v433, 110
        %v439 = vpop.permute.xlu0 %438
        %vm440 = vcmask 900096
        %v441 = vsel %vm440, %v435, %v437
        %v442 = vsel %vm440, %v437, %v439
        %v446 = vrot.slane %v360, 4
        %v447 = vrot.slane %v361, 4
        %v448 = vrot.slane %v362, 4
        %449 = vrot.lane.b32.xlu0 %v446, 96
        %v450 = vpop.permute.xlu0 %449
        %451 = vrot.lane.b32.xlu0 %v447, 96
        %v452 = vpop.permute.xlu0 %451
        %453 = vrot.lane.b32.xlu0 %v448, 96
        %v454 = vpop.permute.xlu0 %453
        %vm455 = vcmask 785408
        %v456 = vsel %vm455, %v450, %v452
        %v457 = vsel %vm455, %v452, %v454
        %v458 = vrot.slane %v278, 2
        %v459 = vrot.slane %v273, 2
        %v460 = vrot.slane %v281, 2
        %461 = vrot.lane.b32.xlu0 %v458, 95
        %v462 = vpop.permute.xlu0 %461
        %463 = vrot.lane.b32.xlu0 %v459, 95
        %v464 = vpop.permute.xlu0 %463
        %465 = vrot.lane.b32.xlu0 %v460, 95
        %v466 = vpop.permute.xlu0 %465
        %vm467 = vcmask 777216
        %v468 = vsel %vm467, %v462, %v464
        %v469 = vsel %vm467, %v464, %v466
        %473 = vrot.lane.b32.xlu0 %v372, 94
        %v474 = vpop.permute.xlu0 %473
        %475 = vrot.lane.b32.xlu0 %v373, 94
        %v476 = vpop.permute.xlu0 %475
        %477 = vrot.lane.b32.xlu0 %v374, 94
        %v478 = vpop.permute.xlu0 %477
        %vm479 = vcmask 769024
        %v480 = vsel %vm479, %v474, %v476
        %v481 = vsel %vm479, %v476, %v478
        %vm482 = vcmask 1041408
        %v485 = vsel %vm482, %v299, %v387
        %v488 = vsel %vm482, %v300, %v388
        %vm489 = vcmask 1043456
        %v491 = vsel %vm489, %v485, %v402
        %v493 = vsel %vm489, %v488, %v403
        %vm494 = vcmask 1045504
        %v496 = vsel %vm494, %v491, %v417
        %v499 = vsel %vm494, %v493, %v418
        %v503 = vsel %vm482, %v426, %v441
        %v506 = vsel %vm482, %v427, %v442
        %v508 = vsel %vm489, %v503, %v456
        %v510 = vsel %vm489, %v506, %v457
        %v512 = vsel %vm494, %v508, %v468
        %v515 = vsel %vm494, %v510, %v469
        %v517 = vld [vmem:[%s2] sm:$0xf]
        %519 = vset.pattern.permute.xlu0 0
        %520 = vperm.xlu0 %519, %v517
        %v521 = vpop.permute.xlu0 %520
        %vm523 = vcmask 293888
        %v525 = vsel %vm523, %v258, 0
        %v528 = vsel %vm482, %v480, 0
        %v531 = vsel %vm482, %v481, 0
        %533 = vmatprep.subr.bf16.mxu0 0
        %534 = vmatpush1.bf16.msra.mxu0 0
        %535 = vmatprep.subr.bf16.mxu0 0
        %536 = vmatpush1.bf16.msra.mxu0 0
        %537 = vmatprep.subr.bf16.mxu0 0
        %538 = vmatpush1.bf16.msra.mxu0 0
        %539 = vmatprep.subr.bf16.mxu0 0
        %540 = vmatpush1.bf16.msra.mxu0 0
        %541 = vmatprep.subr.bf16.mxu0 0
        %542 = vmatpush1.bf16.msra.mxu0 0
        %543 = vmatprep.subr.bf16.mxu0 %v531
        %544 = vmatpush1.bf16.msra.mxu0 %v528
        %545 = vmatprep.subr.bf16.mxu0 %v515
        %546 = vmatpush1.bf16.msra.mxu0 %v512
        %547 = vmatprep.subr.bf16.mxu0 %v499
        %548 = vmatpush1.bf16.msra.mxu0 %v496
        %549 = vmatprep.subr.bf16.mxu0 0
        %550 = vmatpush2.bf16.msra.mxu0 0
        %551 = vmatprep.subr.bf16.mxu0 0
        %552 = vmatpush2.bf16.msra.mxu0 0
        %553 = vmatprep.subr.bf16.mxu0 0
        %554 = vmatpush2.bf16.msra.mxu0 0
        %555 = vmatprep.subr.bf16.mxu0 0
        %556 = vmatpush2.bf16.msra.mxu0 0
        %557 = vmatprep.subr.bf16.mxu0 0
        %558 = vmatpush2.bf16.msra.mxu0 0
        %559 = vmatprep.subr.bf16.mxu0 0
        %560 = vmatpush2.bf16.msra.mxu0 0
        %561 = vmatprep.subr.bf16.mxu0 0
        %562 = vmatpush2.bf16.msra.mxu0 0
        %563 = vmatprep.subr.bf16.mxu0 0
        %564 = vmatpush2.bf16.msra.mxu0 0
        %565 = vmatprep.mubr.bf16.mxu0 0
        %566 = vmatmul.mubr.bf16.gmra.mxu0 %v525
        %v567 = vpop.f32.mrf.mxu0
        %v568 = vadd.f32 %v521, %v567
        %v569 = vpop.f32.mrf.mxu0
        %v570 = vadd.f32 %v521, %v569
        %v571 = vpop.f32.mrf.mxu0
        %v572 = vpop.f32.mrf.mxu0
        %573 = vdwg.mxu0
        %v574 = vmax.f32 %v568, 0.0
        %v575 = vmax.f32 %v570, 0.0
        %v576 = vpack.c.bf16 %v574, %v574
        %v577 = vpack.c.bf16 %v575, %v575
        %v578 = vld [vmem:[%s3] sm:$0x3]
        %581 = vrot.lane.b32.xlu0 %v576, 17
        %v582 = vpop.permute.xlu0 %581
        %583 = vrot.lane.b32.xlu0 %v577, 17
        %v584 = vpop.permute.xlu0 %583
        %v585 = vsel %vm272, %v582, %v584
        %v588 = vsel %vm275, 0, %v582
        %v591 = vsel %vm275, %v584, 0
        %v593 = vsel %vm297, %v588, 0
        %v594 = vsel %vm298, %v585, 0
        %v595 = vsel %vm321, %v588, 0
        %v596 = vsel %vm322, %v585, 0
        %v597 = vsel %vm323, %v591, 0
        %v598 = vsel %vm333, %v588, 0
        %v599 = vsel %vm334, %v585, 0
        %v600 = vsel %vm335, %v591, 0
        %v601 = vsel %vm345, %v588, 0
        %v602 = vsel %vm346, %v585, 0
        %v603 = vsel %vm347, %v591, 0
        %v604 = vsel %vm357, %v588, 0
        %v605 = vsel %vm358, %v585, 0
        %v606 = vsel %vm359, %v591, 0
        %v607 = vsel %vm369, %v588, 0
        %v608 = vsel %vm370, %v585, 0
        %v609 = vsel %vm371, %v591, 0
        %v612 = vrot.slane %v588, 6
        %v613 = vrot.slane %v585, 6
        %v614 = vrot.slane %v591, 6
        %615 = vrot.lane.b32.xlu0 %v612, 127
        %v616 = vpop.permute.xlu0 %615
        %617 = vrot.lane.b32.xlu0 %v613, 127
        %v618 = vpop.permute.xlu0 %617
        %619 = vrot.lane.b32.xlu0 %v614, 127
        %v620 = vpop.permute.xlu0 %619
        %v621 = vsel %vm386, %v616, %v618
        %v622 = vsel %vm386, %v618, %v620
        %v626 = vrot.slane %v595, 4
        %v627 = vrot.slane %v596, 4
        %v628 = vrot.slane %v597, 4
        %629 = vrot.lane.b32.xlu0 %v626, 126
        %v630 = vpop.permute.xlu0 %629
        %631 = vrot.lane.b32.xlu0 %v627, 126
        %v632 = vpop.permute.xlu0 %631
        %633 = vrot.lane.b32.xlu0 %v628, 126
        %v634 = vpop.permute.xlu0 %633
        %v635 = vsel %vm401, %v630, %v632
        %v636 = vsel %vm401, %v632, %v634
        %v640 = vrot.slane %v598, 2
        %v641 = vrot.slane %v599, 2
        %v642 = vrot.slane %v600, 2
        %643 = vrot.lane.b32.xlu0 %v640, 112
        %v644 = vpop.permute.xlu0 %643
        %645 = vrot.lane.b32.xlu0 %v641, 112
        %v646 = vpop.permute.xlu0 %645
        %647 = vrot.lane.b32.xlu0 %v642, 112
        %v648 = vpop.permute.xlu0 %647
        %v649 = vsel %vm416, %v644, %v646
        %v650 = vsel %vm416, %v646, %v648
        %651 = vrot.lane.b32.xlu0 %v588, 111
        %v652 = vpop.permute.xlu0 %651
        %653 = vrot.lane.b32.xlu0 %v585, 111
        %v654 = vpop.permute.xlu0 %653
        %655 = vrot.lane.b32.xlu0 %v591, 111
        %v656 = vpop.permute.xlu0 %655
        %v657 = vsel %vm425, %v652, %v654
        %v658 = vsel %vm425, %v654, %v656
        %v662 = vrot.slane %v601, 6
        %v663 = vrot.slane %v602, 6
        %v664 = vrot.slane %v603, 6
        %665 = vrot.lane.b32.xlu0 %v662, 110
        %v666 = vpop.permute.xlu0 %665
        %667 = vrot.lane.b32.xlu0 %v663, 110
        %v668 = vpop.permute.xlu0 %667
        %669 = vrot.lane.b32.xlu0 %v664, 110
        %v670 = vpop.permute.xlu0 %669
        %v671 = vsel %vm440, %v666, %v668
        %v672 = vsel %vm440, %v668, %v670
        %v676 = vrot.slane %v604, 4
        %v677 = vrot.slane %v605, 4
        %v678 = vrot.slane %v606, 4
        %679 = vrot.lane.b32.xlu0 %v676, 96
        %v680 = vpop.permute.xlu0 %679
        %681 = vrot.lane.b32.xlu0 %v677, 96
        %v682 = vpop.permute.xlu0 %681
        %683 = vrot.lane.b32.xlu0 %v678, 96
        %v684 = vpop.permute.xlu0 %683
        %v685 = vsel %vm455, %v680, %v682
        %v686 = vsel %vm455, %v682, %v684
        %v687 = vrot.slane %v588, 2
        %v688 = vrot.slane %v585, 2
        %v689 = vrot.slane %v591, 2
        %690 = vrot.lane.b32.xlu0 %v687, 95
        %v691 = vpop.permute.xlu0 %690
        %692 = vrot.lane.b32.xlu0 %v688, 95
        %v693 = vpop.permute.xlu0 %692
        %694 = vrot.lane.b32.xlu0 %v689, 95
        %v695 = vpop.permute.xlu0 %694
        %v696 = vsel %vm467, %v691, %v693
        %v697 = vsel %vm467, %v693, %v695
        %701 = vrot.lane.b32.xlu0 %v607, 94
        %v702 = vpop.permute.xlu0 %701
        %703 = vrot.lane.b32.xlu0 %v608, 94
        %v704 = vpop.permute.xlu0 %703
        %705 = vrot.lane.b32.xlu0 %v609, 94
        %v706 = vpop.permute.xlu0 %705
        %v707 = vsel %vm479, %v702, %v704
        %v708 = vsel %vm479, %v704, %v706
        %v711 = vsel %vm482, %v593, %v621
        %v714 = vsel %vm482, %v594, %v622
        %v716 = vsel %vm489, %v711, %v635
        %v718 = vsel %vm489, %v714, %v636
        %v720 = vsel %vm494, %v716, %v649
        %v723 = vsel %vm494, %v718, %v650
        %v727 = vsel %vm482, %v657, %v671
        %v730 = vsel %vm482, %v658, %v672
        %v732 = vsel %vm489, %v727, %v685
        %v734 = vsel %vm489, %v730, %v686
        %v736 = vsel %vm494, %v732, %v696
        %v739 = vsel %vm494, %v734, %v697
        %v741 = vld [vmem:[%s4] sm:$0xf]
        %743 = vset.pattern.permute.xlu0 0
        %744 = vperm.xlu0 %743, %v741
        %v745 = vpop.permute.xlu0 %744
        %v748 = vsel %vm523, %v578, 0
        %v751 = vsel %vm482, %v707, 0
        %v754 = vsel %vm482, %v708, 0
        %756 = vmatprep.subr.bf16.mxu0 0
        %757 = vmatpush1.bf16.msra.mxu0 0
        %758 = vmatprep.subr.bf16.mxu0 0
        %759 = vmatpush1.bf16.msra.mxu0 0
        %760 = vmatprep.subr.bf16.mxu0 0
        %761 = vmatpush1.bf16.msra.mxu0 0
        %762 = vmatprep.subr.bf16.mxu0 0
        %763 = vmatpush1.bf16.msra.mxu0 0
        %764 = vmatprep.subr.bf16.mxu0 0
        %765 = vmatpush1.bf16.msra.mxu0 0
        %766 = vmatprep.subr.bf16.mxu0 %v754
        %767 = vmatpush1.bf16.msra.mxu0 %v751
        %768 = vmatprep.subr.bf16.mxu0 %v739
        %769 = vmatpush1.bf16.msra.mxu0 %v736
        %770 = vmatprep.subr.bf16.mxu0 %v723
        %771 = vmatpush1.bf16.msra.mxu0 %v720
        %772 = vmatprep.subr.bf16.mxu0 0
        %773 = vmatpush2.bf16.msra.mxu0 0
        %774 = vmatprep.subr.bf16.mxu0 0
        %775 = vmatpush2.bf16.msra.mxu0 0
        %776 = vmatprep.subr.bf16.mxu0 0
        %777 = vmatpush2.bf16.msra.mxu0 0
        %778 = vmatprep.subr.bf16.mxu0 0
        %779 = vmatpush2.bf16.msra.mxu0 0
        %780 = vmatprep.subr.bf16.mxu0 0
        %781 = vmatpush2.bf16.msra.mxu0 0
        %782 = vmatprep.subr.bf16.mxu0 0
        %783 = vmatpush2.bf16.msra.mxu0 0
        %784 = vmatprep.subr.bf16.mxu0 0
        %785 = vmatpush2.bf16.msra.mxu0 0
        %786 = vmatprep.subr.bf16.mxu0 0
        %787 = vmatpush2.bf16.msra.mxu0 0
        %788 = vmatprep.mubr.bf16.mxu0 0
        %789 = vmatmul.mubr.bf16.gmra.mxu0 %v748
        %v790 = vpop.f32.mrf.mxu0
        %v791 = vadd.f32 %v745, %v790
        %v792 = vpop.f32.mrf.mxu0
        %v793 = vadd.f32 %v745, %v792
        %v794 = vpop.f32.mrf.mxu0
        %v795 = vpop.f32.mrf.mxu0
        %796 = vdwg.mxu0
        %v797 = vunpack.c.l.bf16 %v226
        %v799 = vcombine.high %v797, %v797
        %v801 = vadd.f32 %v791, %v797
        %v802 = vadd.f32 %v793, %v799
        %v803 = vmax.f32 %v801, 0.0
        %v804 = vmax.f32 %v802, 0.0
        %v807 = vcombine.low %v803, %v804
        %809 = vst [vmem:[%s217] sm:$0xff] %v807
        %s810 = sand.u32 %s137, 1
        %s811 = scalar_lea.sflag [#allocation3], %s810
        %s812 = sand.u32 %s137, 1
        %s813 = smul.addr %s812, 8
        %s814 = scalar_lea.vmem [#allocation2], %s813
        // Predicated region
        $region41: #{tpu_custom_call.1} parent=39 // pred_check
          %p815 = pneg %p147
        $region42: #{tpu_custom_call.1} parent=39 // pred_check_branch
          %817 = sbr.rel (%p815) target = $region44
        $region43: #{tpu_custom_call.1} parent=39 // pred_region
          %s819 = ssub.s32 128, 128
          %820 = vsyncadd %s811, %s819
          %s821 = smul.addr %s19, 2
          %s822 = smul.addr %s821, 64
          %s823 = scalar_lea.hbm %s5, %s822
          %s825 = sshll.u32 %s814, 4
          %s826 = int_to_ptr.vmem [resolvable:$true] %s825
          %828 = dma.vmem_to_hbm [thread:$0]  %s826, 128, %s823, %s811
        $region44: #{tpu_custom_call.1} parent=39 // pred_fallthru
          _
      $region40: #{tpu_custom_call.1} parent=5 // pred_fallthru
        _
      %p829 = scmp.le.s32.totalorder 2, %s14
      // Predicated region
      $region45: #{tpu_custom_call.1} parent=5 // pred_check
        %p830 = pneg %p829
      $region46: #{tpu_custom_call.1} parent=5 // pred_check_branch
        %832 = sbr.rel (%p830) target = $region48
      $region47: #{tpu_custom_call.1} parent=5 // pred_region
        %s833 = ssub.s32 %s14, 2
        // Predicated region
        $region49: #{tpu_custom_call.1} parent=47 // pred_check
          %p834 = pneg %p153
        $region50: #{tpu_custom_call.1} parent=47 // pred_check_branch
          %836 = sbr.rel (%p834) target = $region52
        $region51: #{tpu_custom_call.1} parent=47 // pred_region
          %s837 = sand.u32 %s138, 1
          %s838 = scalar_lea.sflag [#allocation3], %s837
          %s839 = sand.u32 %s138, 1
          %s840 = smul.addr %s839, 8
          %s841 = scalar_lea.vmem [#allocation2], %s840
          %842 = dma.done %s838, 128
        $region52: #{tpu_custom_call.1} parent=47 // pred_fallthru
          _
      $region48: #{tpu_custom_call.1} parent=5 // pred_fallthru
        _
    $region6: #{tpu_custom_call.1} parent=1 // loop_footer
      %s18 = sadd.s32 1, %s14
    $region7: #{tpu_custom_call.1} parent=1 // loop_footer_branch
      %13 = sbr.rel target = $region3
    $region8: #{tpu_custom_call.1} parent=1 // loop_exit
      _
    %843 = vsyncpa [#allocation3], 1
    %s844 = scalar_lea.sflag [#allocation3], 1
    %845 = vsyncpa %s844, 1

</llo_original>
